<compile_context>
chip_gen: v6e
topology: v6e:2x2x1
jax: 0.10.0
libtpu: 0.0.40
codegen_flags: <defaults>
</compile_context>

<pallas_src>
import functools

import jax
import jax.numpy as jnp
from jax.experimental import pallas as pl
from jax.experimental.pallas import tpu as pltpu


_TARGET_TILE_BYTES = 2 * 1024 * 1024  # per (block_b, V) f32 tile; ~4 live tiles -> ~8 MiB


def _word_counting_kernel(utt_ref, wc_ref, new_wc_ref, partial_ref, *,
                          batch, block_b, needs_mask):
    """One grid step handles a (block_b, V) tile of utterances.

    utt_ref:     (block_b, V) f32   utterances tile
    wc_ref:      (1, V) f32         word_counts state row (grid-invariant block)
    new_wc_ref:  (block_b, V) f32   updated word_counts tile (PyTorch broadcast result)
    partial_ref: (1, 1, V) f32      per-block column sums of utterances (lane-dense)
    """
    utt = utt_ref[...]

    # State update: reproduce PyTorch's (V,) + (B,V) broadcast exactly.
    new_wc_ref[...] = wc_ref[...] + utt

    if needs_mask:
        # Partial last tile: rows >= batch are out-of-bounds garbage reads; zero
        # them out of the cost reduction (their writeback is dropped by Pallas).
        i = pl.program_id(0)
        row = jax.lax.broadcasted_iota(jnp.int32, utt.shape, 0) + i * block_b
        utt = jnp.where(row < batch, utt, 0.0)

    # Per-block partial sums over the batch (sublane) axis only; the cross-lane
    # reduction and the divide by denom are done once in the wrapper.
    partial_ref[...] = jnp.sum(utt, axis=0, keepdims=True)[None]


def word_counting_forward(utterances, word_counts, oov_prob, *, block_b=None):
    """WordCountingModuleAdapted.forward on TPU via Pallas.

    Args:
      utterances:  (B, V) float32
      word_counts: (V,)   float32 module state
      oov_prob:    python float or scalar array (runtime value, never enters kernel)
      block_b:     optional batch tile override (multiple of 8, or >= B)

    Returns:
      cost:            () float32
      new_word_counts: (B, V) float32 (the post-forward `self.word_counts`; Pallas has
                       no module state, so it is returned explicitly)
    """
    B, V = utterances.shape
    utterances = utterances.astype(jnp.float32)
    wc = word_counts.astype(jnp.float32)
    wc_2d = wc.reshape(1, V)

    # Tile sizing: big enough to amortize per-step grid/DMA overhead, small enough
    # that 2 double-buffered (block_b, V) f32 arrays (utterances in + new_wc out)
    # fit every generation's default scoped-VMEM budget (v5e 16 MiB is the floor).
    if block_b is None:
        target_rows = max(8, (_TARGET_TILE_BYTES // (V * 4)) // 8 * 8)
        block_b = min(B, target_rows)
    if block_b >= B:
        block_b = B                       # single block: full-dim tile is always legal
    elif block_b % 8 != 0:
        block_b = max(8, (block_b // 8) * 8)

    num_blocks = pl.cdiv(B, block_b)
    needs_mask = (B % block_b) != 0

    kernel = functools.partial(
        _word_counting_kernel, batch=B, block_b=block_b, needs_mask=needs_mask
    )

    new_wc, partials = pl.pallas_call(
        kernel,
        out_shape=(
            jax.ShapeDtypeStruct((B, V), jnp.float32),
            jax.ShapeDtypeStruct((num_blocks, 1, V), jnp.float32),
        ),
        grid=(num_blocks,),
        in_specs=[
            pl.BlockSpec((block_b, V), lambda i: (i, 0)),   # utterances tile
            pl.BlockSpec((1, V), lambda i: (0, 0)),         # word_counts row (invariant)
        ],
        out_specs=[
            pl.BlockSpec((block_b, V), lambda i: (i, 0)),   # new word_counts tile
            pl.BlockSpec((1, 1, V), lambda i: (i, 0, 0)),   # per-block partial sums
        ],
        compiler_params=pltpu.CompilerParams(
            # No cross-step carry: each output block is written exactly once, so the
            # batch axis can be sharded across TensorCores on v7x.
            dimension_semantics=("parallel",),
        ),
    )(utterances, wc_2d)

    denom = jnp.asarray(oov_prob, jnp.float32) + jnp.sum(wc) - 1.0
    cost = -(jnp.sum(partials) / denom)
    return cost, new_wc


def _reference(utterances, word_counts, oov_prob):
    denom = oov_prob + jnp.sum(word_counts) - 1.0
    cost = -jnp.sum(utterances / denom)
    new_wc = word_counts[None, :] + utterances  # PyTorch broadcast semantics
    return cost, new_wc


if __name__ == "__main__":
    # config: vocab_size=128, oov_prob=6.0
    V = 128
    oov_prob = 6.0
    key = jax.random.PRNGKey(0)

    # Case 1: B=32 -> single grid step (tile sized to the whole batch).
    k1, k2, k3 = jax.random.split(key, 3)
    utterances = jax.nn.softmax(
        jax.random.normal(k1, (32, V), dtype=jnp.float32), axis=-1
    )
    word_counts = jax.random.uniform(
        k2, (V,), dtype=jnp.float32, minval=0.0, maxval=5.0
    )
    cost, new_wc = word_counting_forward(utterances, word_counts, oov_prob)
    jax.block_until_ready((cost, new_wc))
    ref_cost, ref_wc = _reference(utterances, word_counts, oov_prob)
    assert jnp.allclose(cost, ref_cost, rtol=1e-5, atol=1e-5), (cost, ref_cost)
    assert jnp.allclose(new_wc, ref_wc, rtol=1e-5, atol=1e-5)

    # Case 2: B=50 with a forced small tile -> cdiv grid + masked partial last tile.
    utterances2 = jax.nn.softmax(
        jax.random.normal(k3, (50, V), dtype=jnp.float32), axis=-1
    )
    cost2, new_wc2 = word_counting_forward(
        utterances2, word_counts, oov_prob, block_b=16
    )
    jax.block_until_ready((cost2, new_wc2))
    ref_cost2, ref_wc2 = _reference(utterances2, word_counts, oov_prob)
    assert jnp.allclose(cost2, ref_cost2, rtol=1e-5, atol=1e-5), (cost2, ref_cost2)
    assert jnp.allclose(new_wc2, ref_wc2, rtol=1e-5, atol=1e-5)

    print("KERNEL_OK")
</pallas_src>

<mosaic_0001>
module attributes {stable_mosaic.version = 11 : i64} {
  func.func @_word_counting_kernel(%arg0: i32, %arg1: memref<32x128xf32, #tpu.memory_space<vmem>>, %arg2: memref<1x128xf32, #tpu.memory_space<vmem>>, %arg3: memref<32x128xf32, #tpu.memory_space<vmem>>, %arg4: memref<1x1x128xf32, #tpu.memory_space<vmem>>) attributes {dimension_semantics = [#tpu.dimension_semantics<parallel>], iteration_bounds = array<i64: 1>, scalar_prefetch = 0 : i64, scratch_operands = 0 : i64, tpu.core_type = #tpu.core_type<tc>, window_params = [{transform_indices = @transform_0, window_bounds = array<i64: 32, 128>}, {pipeline_mode = #tpu.pipeline_mode<synchronous>, transform_indices = @transform_1, window_bounds = array<i64: 1, 128>}, {transform_indices = @transform_2, window_bounds = array<i64: 32, 128>}, {transform_indices = @transform_3, window_bounds = array<i64: 1, 1, 128>}]} {
    %c0 = arith.constant 0 : index
    %c0_0 = arith.constant 0 : index
    %0 = vector.load %arg1[%c0, %c0_0] : memref<32x128xf32, #tpu.memory_space<vmem>>, vector<32x128xf32>
    %c0_1 = arith.constant 0 : index
    %c0_2 = arith.constant 0 : index
    %1 = vector.load %arg2[%c0_1, %c0_2] : memref<1x128xf32, #tpu.memory_space<vmem>>, vector<1x128xf32>
    %2 = vector.broadcast %1 : vector<1x128xf32> to vector<32x128xf32>
    %3 = arith.addf %2, %0 : vector<32x128xf32>
    %c0_3 = arith.constant 0 : index
    %c0_4 = arith.constant 0 : index
    %4 = vector.load %arg3[%c0_3, %c0_4] : memref<32x128xf32, #tpu.memory_space<vmem>>, vector<32x128xf32>
    tpu.vector_store %arg3[%c0_3, %c0_4], %3 {strides = array<i32>} : memref<32x128xf32, #tpu.memory_space<vmem>>, vector<32x128xf32>,
    %cst = arith.constant dense<0.000000e+00> : vector<128xf32>
    %5 = vector.multi_reduction <add>, %0, %cst [0] : vector<32x128xf32> to vector<128xf32>
    %6 = vector.shape_cast %5 : vector<128xf32> to vector<1x128xf32>
    %7 = vector.shape_cast %6 : vector<1x128xf32> to vector<1x1x128xf32>
    %c0_5 = arith.constant 0 : index
    %c0_6 = arith.constant 0 : index
    %c0_7 = arith.constant 0 : index
    %8 = vector.load %arg4[%c0_5, %c0_6, %c0_7] : memref<1x1x128xf32, #tpu.memory_space<vmem>>, vector<1x1x128xf32>
    tpu.vector_store %arg4[%c0_5, %c0_6, %c0_7], %7 {strides = array<i32>} : memref<1x1x128xf32, #tpu.memory_space<vmem>>, vector<1x1x128xf32>,
    return
  }
  func.func @transform_0(%arg0: i32) -> (i32, i32) {
    %c0_i32 = arith.constant 0 : i32
    %c0_i32_0 = arith.constant 0 : i32
    return %arg0, %c0_i32 : i32, i32
  }
  func.func @transform_1(%arg0: i32) -> (i32, i32) {
    %c0_i32 = arith.constant 0 : i32
    %c0_i32_0 = arith.constant 0 : i32
    %c0_i32_1 = arith.constant 0 : i32
    return %c0_i32, %c0_i32_0 : i32, i32
  }
  func.func @transform_2(%arg0: i32) -> (i32, i32) {
    %c0_i32 = arith.constant 0 : i32
    %c0_i32_0 = arith.constant 0 : i32
    return %arg0, %c0_i32 : i32, i32
  }
  func.func @transform_3(%arg0: i32) -> (i32, i32, i32) {
    %c0_i32 = arith.constant 0 : i32
    %c0_i32_0 = arith.constant 0 : i32
    %c0_i32_1 = arith.constant 0 : i32
    return %arg0, %c0_i32, %c0_i32_0 : i32, i32, i32
  }
}

</mosaic_0001>

<llo_original>
// kernel: tpu_custom_call.1
$region0: #{tpu_custom_call.1}
  #allocation0 [shape = 'u32[]', space=smem, size = 0x4, offset = 0x4, fixed_abs, tag = 'smem constant byte address 0x4 - core index']
  #allocation1 [shape = 'u32[144,128]{1,0:T(1,128)}', space=vmem, size = 0x12000, scoped, tag = 'internal scratch']
  %s0 = inlined_call_operand.hbm [shape: f32[32,128], index: 0, kind: input, shape index: {}]
  %s1 = inlined_call_operand.vmem [shape: f32[1,128], index: 1, kind: input, shape index: {}]
  %s2 = inlined_call_operand.hbm [shape: f32[32,128], index: 2, kind: output, shape index: {0}]
  %s3 = inlined_call_operand.hbm [shape: f32[1,1,128], index: 3, kind: output, shape index: {1}]
  %4 = xla_tuple %s2, %s3
  %s5 = sld [smem:[#allocation0]]
  $region30: #{tpu_custom_call.1} parent=0
    _
  %s7 = ssub.s32 1, %s5
  %s8 = scalar_select 0, %s7, %s5
  $region1: #{tpu_custom_call.1} parent=0
    #allocation2 [shape = 'u8[16384]{0}', space=vmem, size = 0x4000, scoped, tag = 'input window, operand 0, single buffered']
    #allocation3 [shape = 's32[1]{0}', space=sflag, size = 0x4, scoped, tag = 'scoped memory for tpu_custom_call.1']
    #allocation4 [shape = 's32[1]{0}', space=sflag, size = 0x4, scoped, tag = 'scoped memory for tpu_custom_call.1']
    #allocation5 [shape = 'u8[16384]{0}', space=vmem, size = 0x4000, scoped, tag = 'output window, operand 0, single buffered']
    #allocation6 [shape = 'u8[512]{0}', space=vmem, size = 0x400, scoped, tag = 'output window, operand 1, single buffered']
    #allocation7 [shape = 's32[1]{0}', space=sflag, size = 0x4, scoped, tag = 'scoped memory for tpu_custom_call.1']
    %9 = vsyncpa [#allocation3], 0
    %10 = vsyncpa [#allocation4], 0
    %11 = vsyncpa [#allocation7], 0
    // Predicated region
    $region2: #{tpu_custom_call.1} parent=1 // pred_check
      _
    $region3: #{tpu_custom_call.1} parent=1 // pred_check_branch
      %13 = sbr.rel (0) target = $region5
    $region4: #{tpu_custom_call.1} parent=1 // pred_region
      %s15 = ssub.s32 512, 512
      %16 = vsyncadd [#allocation3], %s15
      %s17 = sshll.u32 [#allocation2], 4
      %s18 = int_to_ptr.vmem [resolvable:$true] %s17
      %23 = dma.hbm_to_vmem [thread:$0]  %s0, 512, %s18, [#allocation3], 128, 128, 8
    $region5: #{tpu_custom_call.1} parent=1 // pred_fallthru
      _
    // Predicated region
    $region6: #{tpu_custom_call.1} parent=1 // pred_check
      _
    $region7: #{tpu_custom_call.1} parent=1 // pred_check_branch
      %25 = sbr.rel (0) target = $region9
    $region8: #{tpu_custom_call.1} parent=1 // pred_region
      _
    $region9: #{tpu_custom_call.1} parent=1 // pred_fallthru
      _
    // Predicated region
    $region10: #{tpu_custom_call.1} parent=1 // pred_check
      _
    $region11: #{tpu_custom_call.1} parent=1 // pred_check_branch
      %27 = sbr.rel (0) target = $region13
    $region12: #{tpu_custom_call.1} parent=1 // pred_region
      %28 = dma.done [#allocation3], 512
    $region13: #{tpu_custom_call.1} parent=1 // pred_fallthru
      _
    %v29 = vld [vmem:[#allocation2] sm:$0xff]
    %v30 = vld [vmem:[#allocation2 + $0x8] sm:$0xff]
    %v31 = vld [vmem:[#allocation2 + $0x10] sm:$0xff]
    %v32 = vld [vmem:[#allocation2 + $0x18] sm:$0xff]
    %v33 = vld [vmem:[%s1] sm:$0x1]
    %v35 = vlaneseq
    %v36 = vshrl.u32 %v35, 7
    %v37 = vsub.s32 0, %v36
    %v38 = vrot.slane %v33, %v37
    %v40 = vadd.f32 %v38, %v29
    %v41 = vadd.f32 %v38, %v30
    %v42 = vadd.f32 %v38, %v31
    %v43 = vadd.f32 %v38, %v32
    %44 = vst [vmem:[#allocation5] sm:$0xff] %v40
    %45 = vst [vmem:[#allocation5 + $0x8] sm:$0xff] %v41
    %46 = vst [vmem:[#allocation5 + $0x10] sm:$0xff] %v42
    %47 = vst [vmem:[#allocation5 + $0x18] sm:$0xff] %v43
    %v48 = vadd.f32 %v29, %v30
    %v49 = vadd.f32 %v48, %v31
    %v50 = vadd.f32 %v49, %v32
    %v51 = vrot.slane %v50, 4
    %v52 = vadd.f32 %v50, %v51
    %v53 = vrot.slane %v52, 2
    %v54 = vadd.f32 %v52, %v53
    %v55 = vrot.slane %v54, 1
    %v56 = vadd.f32 %v54, %v55
    %57 = vst [vmem:[#allocation6] sm:$0x1] %v56
    // Predicated region
    $region14: #{tpu_custom_call.1} parent=1 // pred_check
      _
    $region15: #{tpu_custom_call.1} parent=1 // pred_check_branch
      %59 = sbr.rel (0) target = $region17
    $region16: #{tpu_custom_call.1} parent=1 // pred_region
      %s61 = ssub.s32 512, 512
      %62 = vsyncadd [#allocation4], %s61
      %s63 = sshll.u32 [#allocation5], 4
      %s64 = int_to_ptr.vmem [resolvable:$true] %s63
      %69 = dma.vmem_to_hbm [thread:$0]  %s64, 512, %s2, [#allocation4], 128, 128, 8
    $region17: #{tpu_custom_call.1} parent=1 // pred_fallthru
      _
    // Predicated region
    $region18: #{tpu_custom_call.1} parent=1 // pred_check
      _
    $region19: #{tpu_custom_call.1} parent=1 // pred_check_branch
      %71 = sbr.rel (0) target = $region21
    $region20: #{tpu_custom_call.1} parent=1 // pred_region
      %s73 = ssub.s32 16, 16
      %74 = vsyncadd [#allocation7], %s73
      %s76 = sshll.u32 [#allocation6], 4
      %s77 = int_to_ptr.vmem [resolvable:$true] %s76
      %79 = dma.vmem_to_hbm [thread:$0]  %s77, 16, %s3, [#allocation7]
    $region21: #{tpu_custom_call.1} parent=1 // pred_fallthru
      _
    // Predicated region
    $region22: #{tpu_custom_call.1} parent=1 // pred_check
      _
    $region23: #{tpu_custom_call.1} parent=1 // pred_check_branch
      %81 = sbr.rel (0) target = $region25
    $region24: #{tpu_custom_call.1} parent=1 // pred_region
      %82 = dma.done [#allocation4], 512
    $region25: #{tpu_custom_call.1} parent=1 // pred_fallthru
      _
    // Predicated region
    $region26: #{tpu_custom_call.1} parent=1 // pred_check
      _
    $region27: #{tpu_custom_call.1} parent=1 // pred_check_branch
      %84 = sbr.rel (0) target = $region29
    $region28: #{tpu_custom_call.1} parent=1 // pred_region
      %85 = dma.done [#allocation7], 16
    $region29: #{tpu_custom_call.1} parent=1 // pred_fallthru
      _
    %86 = vsyncpa [#allocation3], 1
    %87 = vsyncpa [#allocation4], 1
    %88 = vsyncpa [#allocation7], 1

</llo_original>
